<compile_context>
chip_gen: v5e
topology: v5e:2x2
jax: 0.10.0
libtpu: 0.0.40
codegen_flags: <defaults>
</compile_context>

<pallas_src>
import functools

import jax
import jax.numpy as jnp
from jax.experimental import pallas as pl
from jax.experimental.pallas import tpu as pltpu


SMOOTH = 1.0
IGNORE_INDEX = 255
_LANES = 128


def _dice_kernel(x_ref, t_ref, inter_ref, union_ref, *, ignore_index, hw):
    j = pl.program_id(1)

    @pl.when(j == 0)
    def _init():
        inter_ref[...] = jnp.zeros_like(inter_ref)
        union_ref[...] = jnp.zeros_like(union_ref)

    x = x_ref[0].astype(jnp.float32)     # (C, T) logits, classes on sublanes
    t = t_ref[0]                         # (1, T) int32 targets
    c, tile = x.shape

    # validity: pixel is in-range (ragged last tile) AND not ignore_index
    lane = jax.lax.broadcasted_iota(jnp.int32, (1, tile), 1)
    pix = j * tile + lane                                   # global pixel index
    valid = jnp.logical_and(pix < hw, t != ignore_index)    # (1, T) bool
    validf = valid.astype(jnp.float32)

    # zero masked columns before exp so ragged-tail garbage cannot poison sums
    x = jnp.where(valid, x, 0.0)

    # softmax over the class axis (sublanes); approx reciprocal goes to the EUP
    m = jnp.max(x, axis=0, keepdims=True)
    e = jnp.exp(x - m)
    p = e * pl.reciprocal(jnp.sum(e, axis=0, keepdims=True), approx=True)
    p = p * validf

    class_ids = jax.lax.broadcasted_iota(jnp.int32, (c, tile), 0)
    onehot = jnp.where(jnp.logical_and(class_ids == t, valid), 1.0, 0.0)  # (C, T)

    # Fold per-step contributions down to (C, 128) lane-dense partials before
    # accumulating: lanes stay in place, and the resident output accumulator is
    # only C x 128 (no full-width accumulator read-modify-write per step).
    r = tile // _LANES
    inter_c = (p * onehot).reshape(c, r, _LANES)
    union_c = (p + onehot).reshape(c, r, _LANES)
    inter_ref[0] += jnp.sum(inter_c, axis=1)
    union_ref[0] += jnp.sum(union_c, axis=1)


def _tpu_vmem_capacity_bytes():
    try:
        return int(pltpu.get_tpu_info().vmem_capacity_bytes)
    except Exception:
        return 128 << 20   # v5e / v6e default


def _choose_tile_hw(hw, c, itemsize, work_budget_bytes):
    """Largest lane tile (multiple of 128) whose f32 working set fits the budget."""
    c_pad = max(8, -(-c // 8) * 8)
    # ~10 full-width f32 temporaries live in the per-tile body, plus the
    # double-buffered native-dtype logits block and int32 targets block.
    per_pixel = 10 * c_pad * 4 + 2 * c * itemsize + 2 * 4
    t = (work_budget_bytes // per_pixel) // _LANES * _LANES
    t = max(t, _LANES)
    hw_up = -(-hw // _LANES) * _LANES
    return int(min(t, hw_up))


def dice_loss_pallas(logits, targets, *, smooth=SMOOTH, ignore_index=IGNORE_INDEX):
    """logits: [B, C, H, W] (any float dtype); targets: [B, H, W] int.

    Returns scalar float32 loss matching the PyTorch DiceLoss forward.
    """
    b, c, h, w = logits.shape
    hw = h * w

    # free reshapes only — no transpose, no padding, no dtype upcast in HBM
    x = logits.reshape(b, c, hw)
    t = targets.reshape(b, 1, hw)
    # TODO(synk): handle sub-32-bit target dtypes directly in-kernel; the cast
    # below is a no-op when targets already arrive as int32 (the common case).
    if t.dtype != jnp.int32:
        t = t.astype(jnp.int32)

    vmem_cap = _tpu_vmem_capacity_bytes()
    if vmem_cap <= (96 << 20):            # v7x-class (64 MiB / TC): modest tiles
        work_budget, vmem_limit = 12 << 20, 32 << 20
    else:                                 # v5e / v6e (128 MiB): big lane-dense tiles
        work_budget, vmem_limit = 32 << 20, 64 << 20

    tile_hw = _choose_tile_hw(hw, c, jnp.dtype(x.dtype).itemsize, work_budget)
    n_hw_tiles = pl.cdiv(hw, tile_hw)

    kernel = functools.partial(_dice_kernel, ignore_index=int(ignore_index),
                               hw=int(hw))

    inter, union = pl.pallas_call(
        kernel,
        out_shape=(
            jax.ShapeDtypeStruct((b, c, _LANES), jnp.float32),
            jax.ShapeDtypeStruct((b, c, _LANES), jnp.float32),
        ),
        grid_spec=pltpu.PrefetchScalarGridSpec(
            num_scalar_prefetch=0,
            grid=(b, n_hw_tiles),
            in_specs=[
                pl.BlockSpec((1, c, tile_hw), lambda bi, j: (bi, 0, j)),
                pl.BlockSpec((1, 1, tile_hw), lambda bi, j: (bi, 0, j)),
            ],
            out_specs=[
                pl.BlockSpec((1, c, _LANES), lambda bi, j: (bi, 0, 0)),
                pl.BlockSpec((1, c, _LANES), lambda bi, j: (bi, 0, 0)),
            ],
        ),
        compiler_params=pltpu.CompilerParams(
            dimension_semantics=("parallel", "arbitrary"),
            vmem_limit_bytes=vmem_limit),
    )(x, t)

    # tiny wrapper-side finalize: fold batch + lane partials, dice, mean over C
    inter_c = jnp.sum(inter, axis=(0, 2))   # (C,)
    union_c = jnp.sum(union, axis=(0, 2))   # (C,)
    dice = (2.0 * inter_c + smooth) / (union_c + smooth)
    return 1.0 - jnp.mean(dice)


def dice_loss_ref(logits, targets, *, smooth=SMOOTH, ignore_index=IGNORE_INDEX):
    """Pure-JAX reference mirroring the PyTorch module."""
    num_classes = logits.shape[1]
    probs = jax.nn.softmax(logits.astype(jnp.float32), axis=1)
    onehot = jax.nn.one_hot(targets, num_classes, dtype=jnp.float32)  # B,H,W,C
    onehot = jnp.transpose(onehot, (0, 3, 1, 2))                      # B,C,H,W
    mask = (targets != ignore_index)[:, None, :, :].astype(jnp.float32)
    probs = probs * mask
    onehot = onehot * mask
    dims = (0, 2, 3)
    inter = jnp.sum(probs * onehot, axis=dims)
    union = jnp.sum(probs + onehot, axis=dims)
    dice = (2.0 * inter + smooth) / (union + smooth)
    return 1.0 - jnp.mean(dice)


if __name__ == "__main__":
    key = jax.random.PRNGKey(0)
    k1, k2 = jax.random.split(key)

    B, C, H, W = 2, 4, 16, 16
    logits = jax.random.normal(k1, (B, C, H, W), dtype=jnp.float32)
    targets = jax.random.randint(k2, (B, H, W), 0, C, dtype=jnp.int32)
    # sprinkle in a few ignore_index pixels to exercise the mask
    targets = targets.at[0, 0, :4].set(IGNORE_INDEX)

    loss = jax.block_until_ready(dice_loss_pallas(logits, targets))
    ref = jax.block_until_ready(dice_loss_ref(logits, targets))

    # approx=True softmax reciprocal adds ~1e-3-level relative error to probs
    assert jnp.allclose(loss, ref, atol=2e-3, rtol=2e-3), (loss, ref)
    print("KERNEL_OK")
</pallas_src>

<mosaic_0001>
module attributes {stable_mosaic.version = 11 : i64} {
  func.func @_dice_kernel(%arg0: i32, %arg1: i32, %arg2: memref<1x4x256xf32, #tpu.memory_space<vmem>>, %arg3: memref<1x1x256xi32, #tpu.memory_space<vmem>>, %arg4: memref<1x4x128xf32, #tpu.memory_space<vmem>>, %arg5: memref<1x4x128xf32, #tpu.memory_space<vmem>>) attributes {dimension_semantics = [#tpu.dimension_semantics<parallel>, #tpu.dimension_semantics<arbitrary>], iteration_bounds = array<i64: 2, 1>, scalar_prefetch = 0 : i64, scratch_operands = 0 : i64, tpu.core_type = #tpu.core_type<tc>, window_params = [{transform_indices = @transform_0, window_bounds = array<i64: 1, 4, 256>}, {transform_indices = @transform_1, window_bounds = array<i64: 1, 1, 256>}, {transform_indices = @transform_2, window_bounds = array<i64: 1, 4, 128>}, {transform_indices = @transform_3, window_bounds = array<i64: 1, 4, 128>}]} {
    %c0_i32 = arith.constant 0 : i32
    %0 = arith.cmpi eq, %arg1, %c0_i32 : i32
    %1 = arith.extui %0 : i1 to i32
    %c0_i32_0 = arith.constant 0 : i32
    %2 = arith.cmpi ne, %1, %c0_i32_0 : i32
    scf.if %2 {
      %cst_25 = arith.constant 0.000000e+00 : f32
      %60 = vector.broadcast %cst_25 : f32 to vector<1x4x128xf32>
      %c0_26 = arith.constant 0 : index
      %c0_27 = arith.constant 0 : index
      %c0_28 = arith.constant 0 : index
      %61 = vector.load %arg4[%c0_26, %c0_27, %c0_28] : memref<1x4x128xf32, #tpu.memory_space<vmem>>, vector<1x4x128xf32>
      tpu.vector_store %arg4[%c0_26, %c0_27, %c0_28], %60 {strides = array<i32>} : memref<1x4x128xf32, #tpu.memory_space<vmem>>, vector<1x4x128xf32>,
      %cst_29 = arith.constant 0.000000e+00 : f32
      %62 = vector.broadcast %cst_29 : f32 to vector<1x4x128xf32>
      %c0_30 = arith.constant 0 : index
      %c0_31 = arith.constant 0 : index
      %c0_32 = arith.constant 0 : index
      %63 = vector.load %arg5[%c0_30, %c0_31, %c0_32] : memref<1x4x128xf32, #tpu.memory_space<vmem>>, vector<1x4x128xf32>
      tpu.vector_store %arg5[%c0_30, %c0_31, %c0_32], %62 {strides = array<i32>} : memref<1x4x128xf32, #tpu.memory_space<vmem>>, vector<1x4x128xf32>,
    } else {
    }
    %c0 = arith.constant 0 : index
    %c0_1 = arith.constant 0 : index
    %c0_2 = arith.constant 0 : index
    %3 = vector.load %arg2[%c0, %c0_1, %c0_2] : memref<1x4x256xf32, #tpu.memory_space<vmem>>, vector<1x4x256xf32>
    %4 = vector.shape_cast %3 : vector<1x4x256xf32> to vector<4x256xf32>
    %c0_3 = arith.constant 0 : index
    %c0_4 = arith.constant 0 : index
    %c0_5 = arith.constant 0 : index
    %5 = vector.load %arg3[%c0_3, %c0_4, %c0_5] : memref<1x1x256xi32, #tpu.memory_space<vmem>>, vector<1x1x256xi32>
    %6 = vector.shape_cast %5 : vector<1x1x256xi32> to vector<1x256xi32>
    %7 = tpu.iota {dimensions = array<i32: 1>} : vector<1x256xi32>
    %c256_i32 = arith.constant 256 : i32
    %8 = arith.muli %arg1, %c256_i32 : i32
    %9 = vector.broadcast %8 : i32 to vector<1x256xi32>
    %10 = arith.addi %9, %7 : vector<1x256xi32>
    %c256_i32_6 = arith.constant 256 : i32
    %11 = vector.broadcast %c256_i32_6 : i32 to vector<1x256xi32>
    %12 = arith.cmpi slt, %10, %11 : vector<1x256xi32>
    %c255_i32 = arith.constant 255 : i32
    %13 = vector.broadcast %c255_i32 : i32 to vector<1x256xi32>
    %14 = arith.cmpi ne, %6, %13 : vector<1x256xi32>
    %15 = arith.andi %12, %14 : vector<1x256xi1>
    %16 = arith.extui %15 : vector<1x256xi1> to vector<1x256xi32>
    %17 = arith.sitofp %16 : vector<1x256xi32> to vector<1x256xf32>
    %cst = arith.constant 0.000000e+00 : f32
    %18 = vector.shape_cast %15 : vector<1x256xi1> to vector<1x256xi1>
    %19 = vector.broadcast %18 : vector<1x256xi1> to vector<4x256xi1>
    %20 = vector.broadcast %cst : f32 to vector<4x256xf32>
    %21 = arith.select %19, %4, %20 : vector<4x256xi1>, vector<4x256xf32>
    %cst_7 = arith.constant dense<0xFF800000> : vector<256xf32>
    %22 = vector.multi_reduction <maximumf>, %21, %cst_7 [0] : vector<4x256xf32> to vector<256xf32>
    %23 = vector.shape_cast %22 : vector<256xf32> to vector<1x256xf32>
    %24 = vector.broadcast %23 : vector<1x256xf32> to vector<4x256xf32>
    %25 = arith.subf %21, %24 : vector<4x256xf32>
    %26 = math.exp %25 : vector<4x256xf32>
    %cst_8 = arith.constant dense<0.000000e+00> : vector<256xf32>
    %27 = vector.multi_reduction <add>, %26, %cst_8 [0] : vector<4x256xf32> to vector<256xf32>
    %28 = vector.shape_cast %27 : vector<256xf32> to vector<1x256xf32>
    %29 = tpu.reciprocal %28 {approx = true} : vector<1x256xf32> -> vector<1x256xf32>
    %30 = vector.broadcast %29 : vector<1x256xf32> to vector<4x256xf32>
    %31 = arith.mulf %26, %30 : vector<4x256xf32>
    %32 = vector.broadcast %17 : vector<1x256xf32> to vector<4x256xf32>
    %33 = arith.mulf %31, %32 : vector<4x256xf32>
    %34 = tpu.iota {dimensions = array<i32: 0>} : vector<4x256xi32>
    %35 = vector.broadcast %6 : vector<1x256xi32> to vector<4x256xi32>
    %36 = arith.cmpi eq, %34, %35 : vector<4x256xi32>
    %37 = vector.broadcast %15 : vector<1x256xi1> to vector<4x256xi1>
    %38 = arith.andi %36, %37 : vector<4x256xi1>
    %cst_9 = arith.constant 1.000000e+00 : f32
    %cst_10 = arith.constant 0.000000e+00 : f32
    %39 = vector.broadcast %cst_9 : f32 to vector<4x256xf32>
    %40 = vector.broadcast %cst_10 : f32 to vector<4x256xf32>
    %41 = arith.select %38, %39, %40 : vector<4x256xi1>, vector<4x256xf32>
    %42 = arith.mulf %33, %41 : vector<4x256xf32>
    %43 = vector.shape_cast %42 : vector<4x256xf32> to vector<4x2x128xf32>
    %44 = arith.addf %33, %41 : vector<4x256xf32>
    %45 = vector.shape_cast %44 : vector<4x256xf32> to vector<4x2x128xf32>
    %c0_11 = arith.constant 0 : index
    %c0_12 = arith.constant 0 : index
    %c0_13 = arith.constant 0 : index
    %46 = vector.load %arg4[%c0_11, %c0_12, %c0_13] : memref<1x4x128xf32, #tpu.memory_space<vmem>>, vector<1x4x128xf32>
    %47 = vector.shape_cast %46 : vector<1x4x128xf32> to vector<4x128xf32>
    %cst_14 = arith.constant dense<0.000000e+00> : vector<4x128xf32>
    %48 = vector.multi_reduction <add>, %43, %cst_14 [1] : vector<4x2x128xf32> to vector<4x128xf32>
    %49 = arith.addf %47, %48 : vector<4x128xf32>
    %c0_15 = arith.constant 0 : index
    %c0_16 = arith.constant 0 : index
    %c0_17 = arith.constant 0 : index
    %50 = vector.load %arg4[%c0_15, %c0_16, %c0_17] : memref<1x4x128xf32, #tpu.memory_space<vmem>>, vector<1x4x128xf32>
    %51 = vector.shape_cast %50 : vector<1x4x128xf32> to vector<4x128xf32>
    %52 = vector.shape_cast %49 : vector<4x128xf32> to vector<1x4x128xf32>
    tpu.vector_store %arg4[%c0_15, %c0_16, %c0_17], %52 {strides = array<i32>} : memref<1x4x128xf32, #tpu.memory_space<vmem>>, vector<1x4x128xf32>,
    %c0_18 = arith.constant 0 : index
    %c0_19 = arith.constant 0 : index
    %c0_20 = arith.constant 0 : index
    %53 = vector.load %arg5[%c0_18, %c0_19, %c0_20] : memref<1x4x128xf32, #tpu.memory_space<vmem>>, vector<1x4x128xf32>
    %54 = vector.shape_cast %53 : vector<1x4x128xf32> to vector<4x128xf32>
    %cst_21 = arith.constant dense<0.000000e+00> : vector<4x128xf32>
    %55 = vector.multi_reduction <add>, %45, %cst_21 [1] : vector<4x2x128xf32> to vector<4x128xf32>
    %56 = arith.addf %54, %55 : vector<4x128xf32>
    %c0_22 = arith.constant 0 : index
    %c0_23 = arith.constant 0 : index
    %c0_24 = arith.constant 0 : index
    %57 = vector.load %arg5[%c0_22, %c0_23, %c0_24] : memref<1x4x128xf32, #tpu.memory_space<vmem>>, vector<1x4x128xf32>
    %58 = vector.shape_cast %57 : vector<1x4x128xf32> to vector<4x128xf32>
    %59 = vector.shape_cast %56 : vector<4x128xf32> to vector<1x4x128xf32>
    tpu.vector_store %arg5[%c0_22, %c0_23, %c0_24], %59 {strides = array<i32>} : memref<1x4x128xf32, #tpu.memory_space<vmem>>, vector<1x4x128xf32>,
    return
  }
  func.func @transform_0(%arg0: i32, %arg1: i32) -> (i32, i32, i32) {
    %c0_i32 = arith.constant 0 : i32
    %c0_i32_0 = arith.constant 0 : i32
    return %arg0, %c0_i32, %arg1 : i32, i32, i32
  }
  func.func @transform_1(%arg0: i32, %arg1: i32) -> (i32, i32, i32) {
    %c0_i32 = arith.constant 0 : i32
    %c0_i32_0 = arith.constant 0 : i32
    return %arg0, %c0_i32, %arg1 : i32, i32, i32
  }
  func.func @transform_2(%arg0: i32, %arg1: i32) -> (i32, i32, i32) {
    %c0_i32 = arith.constant 0 : i32
    %c0_i32_0 = arith.constant 0 : i32
    %c0_i32_1 = arith.constant 0 : i32
    return %arg0, %c0_i32, %c0_i32_0 : i32, i32, i32
  }
  func.func @transform_3(%arg0: i32, %arg1: i32) -> (i32, i32, i32) {
    %c0_i32 = arith.constant 0 : i32
    %c0_i32_0 = arith.constant 0 : i32
    %c0_i32_1 = arith.constant 0 : i32
    return %arg0, %c0_i32, %c0_i32_0 : i32, i32, i32
  }
}

</mosaic_0001>

<llo_original>
// kernel: tpu_custom_call.1
$region0: #{tpu_custom_call.1}
  #allocation0 [shape = 'u32[]', space=smem, size = 0x4, offset = 0x4, fixed_abs, tag = 'smem constant byte address 0x4 - core index']
  #allocation1 [shape = 'u32[72,128]{1,0:T(1,128)}', space=vmem, size = 0x9000, scoped, tag = 'internal scratch']
  %s0 = inlined_call_operand.hbm [shape: f32[2,4,256], index: 0, kind: input, shape index: {}]
  %s1 = inlined_call_operand.hbm [shape: s32[2,1,256], index: 1, kind: input, shape index: {}]
  %s2 = inlined_call_operand.hbm [shape: f32[2,4,128], index: 2, kind: output, shape index: {0}]
  %s3 = inlined_call_operand.hbm [shape: f32[2,4,128], index: 3, kind: output, shape index: {1}]
  %4 = xla_tuple %s2, %s3
  %s5 = sld [smem:[#allocation0]]
  $region61: #{tpu_custom_call.1} parent=0
    _
  %s7 = ssub.s32 1, %s5
  %s8 = scalar_select 0, %s7, %s5
  $region1: #{tpu_custom_call.1} parent=0
    #allocation2 [shape = 'u8[8192]{0}', space=vmem, size = 0x2000, scoped, tag = 'input window, operand 0']
    #allocation3 [shape = 's32[2]{0}', space=sflag, size = 0x8, scoped, tag = 'scoped memory for tpu_custom_call.1']
    #allocation4 [shape = 's32[2]{0}', space=sflag, size = 0x8, scoped, tag = 'scoped memory for tpu_custom_call.1']
    #allocation5 [shape = 'u8[2048]{0}', space=vmem, size = 0x800, scoped, tag = 'input window, operand 1']
    #allocation6 [shape = 's32[2]{0}', space=sflag, size = 0x8, scoped, tag = 'scoped memory for tpu_custom_call.1']
    #allocation7 [shape = 'u8[4096]{0}', space=vmem, size = 0x1000, scoped, tag = 'output window, operand 0']
    #allocation8 [shape = 'u8[4096]{0}', space=vmem, size = 0x1000, scoped, tag = 'output window, operand 1']
    #allocation9 [shape = 's32[2]{0}', space=sflag, size = 0x8, scoped, tag = 'scoped memory for tpu_custom_call.1']
    %9 = vsyncpa [#allocation3], 0
    %s10 = scalar_lea.sflag [#allocation3], 1
    %11 = vsyncpa %s10, 0
    %12 = vsyncpa [#allocation6], 0
    %s13 = scalar_lea.sflag [#allocation6], 1
    %14 = vsyncpa %s13, 0
    %15 = vsyncpa [#allocation4], 0
    %s16 = scalar_lea.sflag [#allocation4], 1
    %17 = vsyncpa %s16, 0
    %18 = vsyncpa [#allocation9], 0
    %s19 = scalar_lea.sflag [#allocation9], 1
    %20 = vsyncpa %s19, 0
    loop: start=0, step=1, limit=4
    $region2: #{tpu_custom_call.1} parent=1 // loop_pre_header
      _
    $region3: #{tpu_custom_call.1} parent=1 // loop_header
      %s22 = sphi 0, %s26
      %p23 = scmp.ge.s32.totalorder %s22, 4
      %s29 = sphi 0, %s41
      %s30 = sphi 0, %s37
      %s31 = sphi 0, %s29
      %s32 = sphi 0, %s30
      %s33 = sphi 0, %s31
      %s34 = sphi 0, %s32
      %s46 = sphi 0, %s48
      %s49 = sphi 0, %s46
      %s50 = sphi 0, %s49
      %s66 = sphi 0, %s50
      %s74 = sphi 0, %s76
      %s77 = sphi 0, %s74
      %s78 = sphi 0, %s77
      %s94 = sphi 0, %s78
      %s100 = sphi 0, %s102
      %s103 = sphi 0, %s100
      %s104 = sphi 0, %s103
      %s120 = sphi 0, %s104
      %s126 = sphi 0, %s128
      %s129 = sphi 0, %s126
      %s130 = sphi 0, %s129
      %s146 = sphi 0, %s130
    $region4: #{tpu_custom_call.1} parent=1 // loop_header_branch
      %25 = sbr.rel (%p23) target = $region8
    $region5: #{tpu_custom_call.1} parent=1 // loop_body
      %s27 = ssub.s32 %s22, 1
      %s28 = ssub.s32 %s22, 2
      %s35 = sadd.s32 1, %s30
      %p36 = scmp.ge.s32.totalorder %s35, 1
      %s37 = scalar_select %p36, 0, %s35
      %s38 = sadd.s32 1, %s29
      %s39 = scalar_select %p36, %s38, %s29
      %p40 = scmp.ge.s32.totalorder %s39, 2
      %s41 = scalar_select %p40, 0, %s39
      %s42 = ssub.s32 %s29, %s41
      %s43 = ssub.s32 %s30, %s37
      %s44 = sor.u32 %s42, %s43
      %p45 = scmp.eq.s32.totalorder %s44, 0
      %s47 = sadd.s32 %s46, 1
      %s48 = scalar_select %p45, %s46, %s47
      %p51 = pneg %p45
      %p52 = scmp.eq.s32.totalorder %s22, 1
      %p53 = por %p51, %p52
      %p54 = scmp.ne.s32.totalorder %s46, %s49
      %p55 = scmp.eq.s32.totalorder %s22, 0
      %p56 = por %p54, %p55
      %p57 = scmp.ne.s32.totalorder %s46, %s49
      %p58 = scmp.eq.s32.totalorder %s27, 1
      %p59 = por %p57, %p58
      %p60 = scmp.ne.s32.totalorder %s49, %s50
      %p61 = scmp.eq.s32.totalorder %s27, 0
      %p62 = por %p60, %p61
      %p63 = scmp.ne.s32.totalorder %s49, %s50
      %p64 = scmp.eq.s32.totalorder %s28, 1
      %p65 = por %p63, %p64
      %p67 = scmp.ne.s32.totalorder %s50, %s66
      %p68 = scmp.eq.s32.totalorder %s28, 0
      %p69 = por %p67, %p68
      %s70 = ssub.s32 %s29, %s41
      %s71 = ssub.s32 %s30, %s37
      %s72 = sor.u32 %s70, %s71
      %p73 = scmp.eq.s32.totalorder %s72, 0
      %s75 = sadd.s32 %s74, 1
      %s76 = scalar_select %p73, %s74, %s75
      %p79 = pneg %p73
      %p80 = scmp.eq.s32.totalorder %s22, 1
      %p81 = por %p79, %p80
      %p82 = scmp.ne.s32.totalorder %s74, %s77
      %p83 = scmp.eq.s32.totalorder %s22, 0
      %p84 = por %p82, %p83
      %p85 = scmp.ne.s32.totalorder %s74, %s77
      %p86 = scmp.eq.s32.totalorder %s27, 1
      %p87 = por %p85, %p86
      %p88 = scmp.ne.s32.totalorder %s77, %s78
      %p89 = scmp.eq.s32.totalorder %s27, 0
      %p90 = por %p88, %p89
      %p91 = scmp.ne.s32.totalorder %s77, %s78
      %p92 = scmp.eq.s32.totalorder %s28, 1
      %p93 = por %p91, %p92
      %p95 = scmp.ne.s32.totalorder %s78, %s94
      %p96 = scmp.eq.s32.totalorder %s28, 0
      %p97 = por %p95, %p96
      %s98 = ssub.s32 %s29, %s41
      %p99 = scmp.eq.s32.totalorder %s98, 0
      %s101 = sadd.s32 %s100, 1
      %s102 = scalar_select %p99, %s100, %s101
      %p105 = pneg %p99
      %p106 = scmp.eq.s32.totalorder %s22, 1
      %p107 = por %p105, %p106
      %p108 = scmp.ne.s32.totalorder %s100, %s103
      %p109 = scmp.eq.s32.totalorder %s22, 0
      %p110 = por %p108, %p109
      %p111 = scmp.ne.s32.totalorder %s100, %s103
      %p112 = scmp.eq.s32.totalorder %s27, 1
      %p113 = por %p111, %p112
      %p114 = scmp.ne.s32.totalorder %s103, %s104
      %p115 = scmp.eq.s32.totalorder %s27, 0
      %p116 = por %p114, %p115
      %p117 = scmp.ne.s32.totalorder %s103, %s104
      %p118 = scmp.eq.s32.totalorder %s28, 1
      %p119 = por %p117, %p118
      %p121 = scmp.ne.s32.totalorder %s104, %s120
      %p122 = scmp.eq.s32.totalorder %s28, 0
      %p123 = por %p121, %p122
      %s124 = ssub.s32 %s29, %s41
      %p125 = scmp.eq.s32.totalorder %s124, 0
      %s127 = sadd.s32 %s126, 1
      %s128 = scalar_select %p125, %s126, %s127
      %p131 = pneg %p125
      %p132 = scmp.eq.s32.totalorder %s22, 1
      %p133 = por %p131, %p132
      %p134 = scmp.ne.s32.totalorder %s126, %s129
      %p135 = scmp.eq.s32.totalorder %s22, 0
      %p136 = por %p134, %p135
      %p137 = scmp.ne.s32.totalorder %s126, %s129
      %p138 = scmp.eq.s32.totalorder %s27, 1
      %p139 = por %p137, %p138
      %p140 = scmp.ne.s32.totalorder %s129, %s130
      %p141 = scmp.eq.s32.totalorder %s27, 0
      %p142 = por %p140, %p141
      %p143 = scmp.ne.s32.totalorder %s129, %s130
      %p144 = scmp.eq.s32.totalorder %s28, 1
      %p145 = por %p143, %p144
      %p147 = scmp.ne.s32.totalorder %s130, %s146
      %p148 = scmp.eq.s32.totalorder %s28, 0
      %p149 = por %p147, %p148
      %p150 = scmp.le.s32.totalorder 1, %s22
      %p151 = scmp.lt.s32.totalorder %s22, 3
      %p152 = pnand %p150, %p151
      %p153 = pneg %p152
      // Predicated region
      $region9: #{tpu_custom_call.1} parent=5 // pred_check
        _
      $region10: #{tpu_custom_call.1} parent=5 // pred_check_branch
        %155 = sbr.rel (%p152) target = $region12
      $region11: #{tpu_custom_call.1} parent=5 // pred_region
        %s156 = ssub.s32 %s22, 1
      $region12: #{tpu_custom_call.1} parent=5 // pred_fallthru
        _
      %p157 = scmp.lt.s32.totalorder %s22, 2
      // Predicated region
      $region13: #{tpu_custom_call.1} parent=5 // pred_check
        %p158 = pneg %p157
      $region14: #{tpu_custom_call.1} parent=5 // pred_check_branch
        %160 = sbr.rel (%p158) target = $region16
      $region15: #{tpu_custom_call.1} parent=5 // pred_region
        // Predicated region
        $region17: #{tpu_custom_call.1} parent=15 // pred_check
          %p161 = pneg %p56
        $region18: #{tpu_custom_call.1} parent=15 // pred_check_branch
          %163 = sbr.rel (%p161) target = $region20
        $region19: #{tpu_custom_call.1} parent=15 // pred_region
          %s164 = sand.u32 %s46, 1
          %s165 = scalar_lea.sflag [#allocation3], %s164
          %s166 = sand.u32 %s46, 1
          %s167 = smul.addr %s166, 8
          %s168 = scalar_lea.vmem [#allocation2], %s167
          %s169 = smul.u32 2, %s30
          %171 = vsyncadd %s165, 0
          %s172 = smul.addr %s29, 2
          %s173 = sadd.s32 %s169, %s172
          %s174 = smul.addr %s173, 4
          %s175 = scalar_lea.hbm %s0, %s174
          %s177 = sshll.u32 %s175, 4
          %s178 = int_to_ptr.hbm [resolvable:$true] %s177
          %s179 = sshll.u32 %s168, 4
          %s180 = int_to_ptr.vmem [resolvable:$true] %s179
          %182 = dma.hbm_to_vmem [thread:$0]  %s178, 128, %s180, %s165
        $region20: #{tpu_custom_call.1} parent=15 // pred_fallthru
          _
        // Predicated region
        $region21: #{tpu_custom_call.1} parent=15 // pred_check
          %p183 = pneg %p84
        $region22: #{tpu_custom_call.1} parent=15 // pred_check_branch
          %185 = sbr.rel (%p183) target = $region24
        $region23: #{tpu_custom_call.1} parent=15 // pred_region
          %s186 = sand.u32 %s74, 1
          %s187 = scalar_lea.sflag [#allocation6], %s186
          %s188 = sand.u32 %s74, 1
          %s189 = smul.addr %s188, 2
          %s190 = scalar_lea.vmem [#allocation5], %s189
          %s191 = smul.u32 2, %s30
          %193 = vsyncadd %s187, 0
          %s194 = smul.addr %s29, 2
          %s195 = sadd.s32 %s191, %s194
          %s196 = scalar_lea.hbm %s1, %s195
          %s198 = sshll.u32 %s196, 4
          %s199 = int_to_ptr.hbm [resolvable:$true] %s198
          %s200 = sshll.u32 %s190, 4
          %s201 = int_to_ptr.vmem [resolvable:$true] %s200
          %203 = dma.hbm_to_vmem [thread:$0]  %s199, 32, %s201, %s187
        $region24: #{tpu_custom_call.1} parent=15 // pred_fallthru
          _
      $region16: #{tpu_custom_call.1} parent=5 // pred_fallthru
        _
      %p204 = scmp.le.s32.totalorder 1, %s22
      %p205 = scmp.lt.s32.totalorder %s22, 3
      %p206 = pnand %p204, %p205
      %p207 = pneg %p206
      // Predicated region
      $region25: #{tpu_custom_call.1} parent=5 // pred_check
        _
      $region26: #{tpu_custom_call.1} parent=5 // pred_check_branch
        %209 = sbr.rel (%p206) target = $region28
      $region27: #{tpu_custom_call.1} parent=5 // pred_region
        %s210 = ssub.s32 %s22, 1
        %s211 = sand.u32 %s49, 1
        %s212 = scalar_lea.sflag [#allocation3], %s211
        %s213 = sand.u32 %s49, 1
        %s214 = smul.addr %s213, 8
        %s215 = scalar_lea.vmem [#allocation2], %s214
        // Predicated region
        $region29: #{tpu_custom_call.1} parent=27 // pred_check
          %p216 = pneg %p62
        $region30: #{tpu_custom_call.1} parent=27 // pred_check_branch
          %218 = sbr.rel (%p216) target = $region32
        $region31: #{tpu_custom_call.1} parent=27 // pred_region
          %220 = dma.done %s212, 128
        $region32: #{tpu_custom_call.1} parent=27 // pred_fallthru
          _
        %s221 = sand.u32 %s77, 1
        %s222 = scalar_lea.sflag [#allocation6], %s221
        %s223 = sand.u32 %s77, 1
        %s224 = smul.addr %s223, 2
        %s225 = scalar_lea.vmem [#allocation5], %s224
        // Predicated region
        $region33: #{tpu_custom_call.1} parent=27 // pred_check
          %p226 = pneg %p90
        $region34: #{tpu_custom_call.1} parent=27 // pred_check_branch
          %228 = sbr.rel (%p226) target = $region36
        $region35: #{tpu_custom_call.1} parent=27 // pred_region
          %230 = dma.done %s222, 32
        $region36: #{tpu_custom_call.1} parent=27 // pred_fallthru
          _
        %s231 = sand.u32 %s49, 1
        %s232 = scalar_lea.sflag [#allocation3], %s231
        %s233 = sand.u32 %s49, 1
        %s234 = smul.addr %s233, 8
        %s235 = scalar_lea.vmem [#allocation2], %s234
        %p236 = pneg %p62
        %p237 = pneg %p59
        %s238 = sand.u32 %s77, 1
        %s239 = scalar_lea.sflag [#allocation6], %s238
        %s240 = sand.u32 %s77, 1
        %s241 = smul.addr %s240, 2
        %s242 = scalar_lea.vmem [#allocation5], %s241
        %p243 = pneg %p90
        %p244 = pneg %p87
        %p245 = pneg %p116
        %p246 = pneg %p113
        %s247 = sand.u32 %s103, 1
        %s248 = scalar_lea.sflag [#allocation4], %s247
        %s249 = sand.u32 %s103, 1
        %s250 = smul.addr %s249, 4
        %s251 = scalar_lea.vmem [#allocation7], %s250
        %p252 = pneg %p142
        %p253 = pneg %p139
        %s254 = sand.u32 %s129, 1
        %s255 = scalar_lea.sflag [#allocation9], %s254
        %s256 = sand.u32 %s129, 1
        %s257 = smul.addr %s256, 4
        %s258 = scalar_lea.vmem [#allocation8], %s257
        %s259 = smul.u32 2, %s32
        %s260 = smul.u32 2, %s32
        %p261 = scmp.eq.s32.totalorder %s32, 0
        // Predicated region
        $region37: #{tpu_custom_call.1} parent=27 // pred_check
          %p262 = pneg %p261
        $region38: #{tpu_custom_call.1} parent=27 // pred_check_branch
          %264 = sbr.rel (%p262) target = $region40
        $region39: #{tpu_custom_call.1} parent=27 // pred_region
          %265 = vst [vmem:[%s251] sm:$0xf] 0.0
          %266 = vst [vmem:[%s258] sm:$0xf] 0.0
        $region40: #{tpu_custom_call.1} parent=27 // pred_fallthru
          _
        %v267 = vld [vmem:[%s215] sm:$0xff]
        %v268 = vld [vmem:[%s225] sm:$0x3]
        %v269 = vlaneseq
        %v270 = vand.u32 %v269, 127
        %v271 = vadd.s32 %v270, 128
        %s272 = smul.u32 %s32, 256
        %v273 = vstv %s272
        %v274 = vadd.s32 %v273, %v270
        %v275 = vadd.s32 %v273, %v271
        %vm276 = vcmp.lt.s32.totalorder %v274, 256
        %vm277 = vcmp.lt.s32.totalorder %v275, 256
        %vm278 = vcmp.ne.s32.totalorder %v268, 255
        %v279 = vsel %vm278, 1, 0
        %v280 = vperm.slane %v279, 0
        %v281 = vperm.slane %v279, 1
        %vm282 = vcmp.ne.s32.totalorder %v280, 0
        %vm283 = vcmp.ne.s32.totalorder %v281, 0
        %vm284 = vmand %vm276, %vm282
        %vm285 = vmand %vm277, %vm283
        %v286 = vsel %vm284, 1, 0
        %v287 = vsel %vm285, 1, 0
        %v288 = vcvt.s32.f32 %v286
        %v289 = vcvt.s32.f32 %v287
        %v290 = vperm.slane %v286, 0
        %v291 = vperm.slane %v287, 0
        %vm292 = vcmp.eq.s32.totalorder %v290, 1
        %vm293 = vcmp.eq.s32.totalorder %v291, 1
        %295 = vst [vmem:[#allocation1] ss:$2 sm:$0xff] %v267
        %v296 = vld.sshfl [vmem:[#allocation1] sm:$0xff pattern:$0x75316420]
        %v297 = vld.sshfl [vmem:[#allocation1 + $0x8] sm:$0xff pattern:$0x75316420]
        %v300 = vsel %vm292, %v296, 0.0
        %v301 = vsel %vm293, %v297, 0.0
        %vm302 = vcmask 1043456
        %v303 = vsel %vm302, %v300, -inf
        %v304 = vrot.slane %v303, 4
        %v305 = vmax.f32 %v303, %v304
        %v306 = vrot.slane %v305, 2
        %v307 = vmax.f32 %v305, %v306
        %v308 = vrot.slane %v307, 1
        %v309 = vmax.f32 %v307, %v308
        %v310 = vsel %vm302, %v301, -inf
        %v311 = vrot.slane %v310, 4
        %v312 = vmax.f32 %v310, %v311
        %v313 = vrot.slane %v312, 2
        %v314 = vmax.f32 %v312, %v313
        %v315 = vrot.slane %v314, 1
        %v316 = vmax.f32 %v314, %v315
        %v317 = vsub.f32 %v300, %v309
        %v318 = vsub.f32 %v301, %v316
        %v319 = vmul.f32 %v317, 1.442695
        %v320 = vpow.pop %v319
        %v321 = vmul.f32 %v318, 1.442695
        %v322 = vpow.pop %v321
        %v323 = vsel %vm302, %v320, 0.0
        %v324 = vrot.slane %v323, 4
        %v325 = vadd.f32 %v323, %v324
        %v326 = vrot.slane %v325, 2
        %v327 = vadd.f32 %v325, %v326
        %v328 = vrot.slane %v327, 1
        %v329 = vadd.f32 %v327, %v328
        %v330 = vsel %vm302, %v322, 0.0
        %v331 = vrot.slane %v330, 4
        %v332 = vadd.f32 %v330, %v331
        %v333 = vrot.slane %v332, 2
        %v334 = vadd.f32 %v332, %v333
        %v335 = vrot.slane %v334, 1
        %v336 = vadd.f32 %v334, %v335
        %v337 = vrcp.pop %v329
        %v338 = vrcp.pop %v336
        %v339 = vmul.f32 %v320, %v337
        %v340 = vmul.f32 %v322, %v338
        %v341 = vperm.slane %v288, 0
        %v342 = vperm.slane %v289, 0
        %v343 = vmul.f32 %v339, %v341
        %v344 = vmul.f32 %v340, %v342
        %v345 = vlaneseq
        %v346 = vshrl.u32 %v345, 7
        %v347 = vperm.slane %v268, 0
        %v348 = vperm.slane %v268, 1
        %vm349 = vcmp.eq.s32.totalorder %v346, %v347
        %vm350 = vcmp.eq.s32.totalorder %v346, %v348
        %vm351 = vmand %vm349, %vm292
        %vm352 = vmand %vm350, %vm293
        %v353 = vsel %vm351, 1.0, 0.0
        %v354 = vsel %vm352, 1.0, 0.0
        %v355 = vmul.f32 %v343, %v353
        %v357 = vunpack.c.l.s4 1983009808
        %v358 = vunpack.c.0.s8 %v357
        %v359 = vperm.slane %v355, %v358
        %v360 = vmul.f32 %v344, %v354
        %v362 = vunpack.c.l.s4 1983009808
        %v363 = vunpack.c.0.s8 %v362
        %v364 = vperm.slane %v360, %v363
        %v365 = vrot.slane %v364, 4
        %vm366 = vcmask 1047556
        %v367 = vsel %vm366, %v365, %v359
        %v368 = vrot.slane %v359, 4
        %v369 = vsel %vm366, %v364, %v368
        %v371 = vunpack.c.l.s4 1934713408
        %v372 = vunpack.c.0.s8 %v371
        %v373 = vperm.slane %v367, %v372
        %v375 = vunpack.c.l.s4 1934713408
        %v376 = vunpack.c.0.s8 %v375
        %v377 = vperm.slane %v369, %v376
        %v378 = vrot.slane %v373, 4
        %v379 = vsel %vm366, 0.0, %v378
        %v380 = vrot.slane %v377, 4
        %v381 = vsel %vm366, 0.0, %v380
        %v382 = vadd.f32 %v343, %v353
        %v384 = vunpack.c.l.s4 1983009808
        %v385 = vunpack.c.0.s8 %v384
        %v386 = vperm.slane %v382, %v385
        %v387 = vadd.f32 %v344, %v354
        %v389 = vunpack.c.l.s4 1983009808
        %v390 = vunpack.c.0.s8 %v389
        %v391 = vperm.slane %v387, %v390
        %v392 = vrot.slane %v391, 4
        %v393 = vsel %vm366, %v392, %v386
        %v394 = vrot.slane %v386, 4
        %v395 = vsel %vm366, %v391, %v394
        %v397 = vunpack.c.l.s4 1934713408
        %v398 = vunpack.c.0.s8 %v397
        %v399 = vperm.slane %v393, %v398
        %v401 = vunpack.c.l.s4 1934713408
        %v402 = vunpack.c.0.s8 %v401
        %v403 = vperm.slane %v395, %v402
        %v404 = vrot.slane %v399, 4
        %v405 = vsel %vm366, 0.0, %v404
        %v406 = vrot.slane %v403, 4
        %v407 = vsel %vm366, 0.0, %v406
        %v408 = vld [vmem:[%s251] sm:$0xf]
        %vm409 = vcmask 1041408
        %v410 = vsel %vm409, %v373, 0.0
        %v411 = vrot.slane %v410, 4
        %v412 = vadd.f32 %v410, %v411
        %v413 = vrot.slane %v412, 2
        %v414 = vadd.f32 %v412, %v413
        %v415 = vrot.slane %v414, 1
        %v416 = vadd.f32 %v414, %v415
        %v417 = vsel %vm409, %v379, 0.0
        %v418 = vrot.slane %v417, 4
        %v419 = vadd.f32 %v417, %v418
        %v420 = vrot.slane %v419, 2
        %v421 = vadd.f32 %v419, %v420
        %v422 = vrot.slane %v421, 1
        %v423 = vadd.f32 %v421, %v422
        %v424 = vsel %vm409, %v377, 0.0
        %v425 = vrot.slane %v424, 4
        %v426 = vadd.f32 %v424, %v425
        %v427 = vrot.slane %v426, 2
        %v428 = vadd.f32 %v426, %v427
        %v429 = vrot.slane %v428, 1
        %v430 = vadd.f32 %v428, %v429
        %v431 = vsel %vm409, %v381, 0.0
        %v432 = vrot.slane %v431, 4
        %v433 = vadd.f32 %v431, %v432
        %v434 = vrot.slane %v433, 2
        %v435 = vadd.f32 %v433, %v434
        %v436 = vrot.slane %v435, 1
        %v437 = vadd.f32 %v435, %v436
        %vm442 = vcmask 1041409
        %v443 = vsel %vm442, %v423, %v416
        %vm444 = vcmask 1042434
        %v445 = vsel %vm444, %v430, %v443
        %vm446 = vcmask 1043459
        %v447 = vsel %vm446, %v437, %v445
        %v449 = vadd.f32 %v408, %v447
        %450 = vst [vmem:[%s251] sm:$0xf] %v449
        %v451 = vld [vmem:[%s258] sm:$0xf]
        %v452 = vsel %vm409, %v399, 0.0
        %v453 = vrot.slane %v452, 4
        %v454 = vadd.f32 %v452, %v453
        %v455 = vrot.slane %v454, 2
        %v456 = vadd.f32 %v454, %v455
        %v457 = vrot.slane %v456, 1
        %v458 = vadd.f32 %v456, %v457
        %v459 = vsel %vm409, %v405, 0.0
        %v460 = vrot.slane %v459, 4
        %v461 = vadd.f32 %v459, %v460
        %v462 = vrot.slane %v461, 2
        %v463 = vadd.f32 %v461, %v462
        %v464 = vrot.slane %v463, 1
        %v465 = vadd.f32 %v463, %v464
        %v466 = vsel %vm409, %v403, 0.0
        %v467 = vrot.slane %v466, 4
        %v468 = vadd.f32 %v466, %v467
        %v469 = vrot.slane %v468, 2
        %v470 = vadd.f32 %v468, %v469
        %v471 = vrot.slane %v470, 1
        %v472 = vadd.f32 %v470, %v471
        %v473 = vsel %vm409, %v407, 0.0
        %v474 = vrot.slane %v473, 4
        %v475 = vadd.f32 %v473, %v474
        %v476 = vrot.slane %v475, 2
        %v477 = vadd.f32 %v475, %v476
        %v478 = vrot.slane %v477, 1
        %v479 = vadd.f32 %v477, %v478
        %v484 = vsel %vm442, %v465, %v458
        %v485 = vsel %vm444, %v472, %v484
        %v486 = vsel %vm446, %v479, %v485
        %v488 = vadd.f32 %v451, %v486
        %489 = vst [vmem:[%s258] sm:$0xf] %v488
        %s490 = sand.u32 %s103, 1
        %s491 = scalar_lea.sflag [#allocation4], %s490
        %s492 = sand.u32 %s103, 1
        %s493 = smul.addr %s492, 4
        %s494 = scalar_lea.vmem [#allocation7], %s493
        %s495 = sand.u32 %s129, 1
        %s496 = scalar_lea.sflag [#allocation9], %s495
        %s497 = sand.u32 %s129, 1
        %s498 = smul.addr %s497, 4
        %s499 = scalar_lea.vmem [#allocation8], %s498
        // Predicated region
        $region41: #{tpu_custom_call.1} parent=27 // pred_check
          %p500 = pneg %p113
        $region42: #{tpu_custom_call.1} parent=27 // pred_check_branch
          %502 = sbr.rel (%p500) target = $region44
        $region43: #{tpu_custom_call.1} parent=27 // pred_region
          %504 = vsyncadd %s491, 0
          %s505 = smul.addr %s31, 4
          %s506 = scalar_lea.hbm %s2, %s505
          %s508 = sshll.u32 %s494, 4
          %s509 = int_to_ptr.vmem [resolvable:$true] %s508
          %s510 = sshll.u32 %s506, 4
          %s511 = int_to_ptr.hbm [resolvable:$true] %s510
          %513 = dma.vmem_to_hbm [thread:$0]  %s509, 64, %s511, %s491
        $region44: #{tpu_custom_call.1} parent=27 // pred_fallthru
          _
        // Predicated region
        $region45: #{tpu_custom_call.1} parent=27 // pred_check
          %p514 = pneg %p139
        $region46: #{tpu_custom_call.1} parent=27 // pred_check_branch
          %516 = sbr.rel (%p514) target = $region48
        $region47: #{tpu_custom_call.1} parent=27 // pred_region
          %518 = vsyncadd %s496, 0
          %s519 = smul.addr %s31, 4
          %s520 = scalar_lea.hbm %s3, %s519
          %s522 = sshll.u32 %s499, 4
          %s523 = int_to_ptr.vmem [resolvable:$true] %s522
          %s524 = sshll.u32 %s520, 4
          %s525 = int_to_ptr.hbm [resolvable:$true] %s524
          %527 = dma.vmem_to_hbm [thread:$0]  %s523, 64, %s525, %s496
        $region48: #{tpu_custom_call.1} parent=27 // pred_fallthru
          _
      $region28: #{tpu_custom_call.1} parent=5 // pred_fallthru
        _
      %p528 = scmp.le.s32.totalorder 2, %s22
      // Predicated region
      $region49: #{tpu_custom_call.1} parent=5 // pred_check
        %p529 = pneg %p528
      $region50: #{tpu_custom_call.1} parent=5 // pred_check_branch
        %531 = sbr.rel (%p529) target = $region52
      $region51: #{tpu_custom_call.1} parent=5 // pred_region
        %s532 = ssub.s32 %s22, 2
        // Predicated region
        $region53: #{tpu_custom_call.1} parent=51 // pred_check
          %p533 = pneg %p119
        $region54: #{tpu_custom_call.1} parent=51 // pred_check_branch
          %535 = sbr.rel (%p533) target = $region56
        $region55: #{tpu_custom_call.1} parent=51 // pred_region
          %s536 = sand.u32 %s104, 1
          %s537 = scalar_lea.sflag [#allocation4], %s536
          %s538 = sand.u32 %s104, 1
          %s539 = smul.addr %s538, 4
          %s540 = scalar_lea.vmem [#allocation7], %s539
          %542 = dma.done %s537, 64
        $region56: #{tpu_custom_call.1} parent=51 // pred_fallthru
          _
        // Predicated region
        $region57: #{tpu_custom_call.1} parent=51 // pred_check
          %p543 = pneg %p145
        $region58: #{tpu_custom_call.1} parent=51 // pred_check_branch
          %545 = sbr.rel (%p543) target = $region60
        $region59: #{tpu_custom_call.1} parent=51 // pred_region
          %s546 = sand.u32 %s130, 1
          %s547 = scalar_lea.sflag [#allocation9], %s546
          %s548 = sand.u32 %s130, 1
          %s549 = smul.addr %s548, 4
          %s550 = scalar_lea.vmem [#allocation8], %s549
          %552 = dma.done %s547, 64
        $region60: #{tpu_custom_call.1} parent=51 // pred_fallthru
          _
      $region52: #{tpu_custom_call.1} parent=5 // pred_fallthru
        _
    $region6: #{tpu_custom_call.1} parent=1 // loop_footer
      %s26 = sadd.s32 1, %s22
    $region7: #{tpu_custom_call.1} parent=1 // loop_footer_branch
      %21 = sbr.rel target = $region3
    $region8: #{tpu_custom_call.1} parent=1 // loop_exit
      _
    %553 = vsyncpa [#allocation3], 1
    %s554 = scalar_lea.sflag [#allocation3], 1
    %555 = vsyncpa %s554, 1
    %556 = vsyncpa [#allocation6], 1
    %s557 = scalar_lea.sflag [#allocation6], 1
    %558 = vsyncpa %s557, 1
    %559 = vsyncpa [#allocation4], 1
    %s560 = scalar_lea.sflag [#allocation4], 1
    %561 = vsyncpa %s560, 1
    %562 = vsyncpa [#allocation9], 1
    %s563 = scalar_lea.sflag [#allocation9], 1
    %564 = vsyncpa %s563, 1

</llo_original>
